<compile_context>
chip_gen: v7x
topology: tpu7x:2x2x1
jax: 0.10.0
libtpu: 0.0.40
codegen_flags: <defaults>
</compile_context>

<pallas_src>
import functools

import jax
import jax.numpy as jnp
from jax.experimental import pallas as pl
from jax.experimental.pallas import tpu as pltpu


def _round_up(n, m):
    return ((n + m - 1) // m) * m


def _mlp_kernel(x_ref, w_ref, b_ref, *rest, training, keep_threshold, inv_keep):
    if training:
        bits_ref, o_ref = rest
    else:
        (o_ref,) = rest

    # fc1: y = x @ W  (weight already [Cin, Cout]; MXU matmul, f32 accumulation)
    y = jnp.dot(x_ref[...], w_ref[...], preferred_element_type=jnp.float32)
    # bias + ReLU in f32 (VPU)
    y = jnp.maximum(y + b_ref[...], 0.0)

    if training:
        # F.dropout: keep with prob (1-p), scale kept values by 1/(1-p).
        # Integer threshold: P(bits >= p * 2^32) == 1 - p  (no float conversion).
        keep = bits_ref[...] >= jnp.uint32(keep_threshold)
        y = jnp.where(keep, y * jnp.float32(inv_keep), jnp.float32(0.0))

    o_ref[...] = y.astype(o_ref.dtype)


def mlp_block(x, w, b, *, training=False, p=0.5, rng_key=None,
              block_b=256, block_n=512, matmul_dtype=None,
              weight_resident_limit=16 * 1024 * 1024):
    """Pallas implementation of MLP_block.forward.

    x: [B, in_channel]
    w: [out_channel, in_channel]  (nn.Linear weight layout)
    b: [out_channel]
    """
    B, cin = x.shape
    cout, cin_w = w.shape
    assert cin == cin_w and b.shape == (cout,)
    out_dtype = x.dtype
    mm_dtype = jnp.dtype(matmul_dtype) if matmul_dtype is not None else jnp.dtype(x.dtype)

    # ---------------- padded / tiled geometry ----------------
    cin_p = _round_up(cin, 128)        # lane-aligned K
    cout_p = _round_up(cout, 128)      # lane-dense output (unmasked vst)

    b8 = _round_up(B, 8)
    tb = max(8, _round_up(min(block_b, b8), 8))
    if b8 // tb < 2 and b8 > 8:
        # keep >= 2 "parallel" grid steps so both TensorCores get work (v7x/megacore)
        tb = _round_up(pl.cdiv(b8, 2), 8)
    b_pad = _round_up(b8, tb)

    itemsize = jnp.dtype(mm_dtype).itemsize
    weight_bytes = cin_p * cout_p * itemsize
    # If the full weight does not comfortably fit in VMEM (v7x has only 64 MiB),
    # tile the output-channel axis instead of keeping the whole weight resident.
    n_tiled = (weight_bytes > weight_resident_limit) and cout_p > 128
    tn = min(_round_up(block_n, 128), cout_p) if n_tiled else cout_p
    cout_p = _round_up(cout_p, tn)
    # TODO(synk): a huge-Cin / small-Cout weight would need a K-tiled accumulator
    # plan (pl.when init/finalize) instead of N tiling; not implemented here.

    # -------- pad + cast once in the wrapper (layout plumbing, not compute) --------
    xp = jnp.zeros((b_pad, cin_p), mm_dtype).at[:B, :cin].set(x.astype(mm_dtype))
    wp = jnp.zeros((cin_p, cout_p), mm_dtype).at[:cin, :cout].set(w.T.astype(mm_dtype))
    bp = jnp.zeros((1, cout_p), jnp.float32).at[0, :cout].set(b.astype(jnp.float32))

    inputs = [xp, wp, bp]
    if training:
        if rng_key is None:
            rng_key = jax.random.PRNGKey(0)
        # Host-side uint32 bits: portable (TPU + interpret), one compare in-kernel.
        bits = jax.random.bits(rng_key, (b_pad, cout_p), dtype=jnp.uint32)
        inputs.append(bits)

    # ---------------- block specs ----------------
    if n_tiled:
        # N outer so each weight N-tile stays resident across the batch loop.
        grid = (cout_p // tn, b_pad // tb)
        x_spec = pl.BlockSpec((tb, cin_p), lambda j, i: (i, 0))
        w_spec = pl.BlockSpec((cin_p, tn), lambda j, i: (0, j))
        b_spec = pl.BlockSpec((1, tn), lambda j, i: (0, j))
        io_spec = pl.BlockSpec((tb, tn), lambda j, i: (i, j))
        dims = ("parallel", "parallel")
    else:
        grid = (b_pad // tb,)
        x_spec = pl.BlockSpec((tb, cin_p), lambda i: (i, 0))
        # Constant operands: whole-array VMEM residency, no double-buffering.
        w_spec = pl.BlockSpec(memory_space=pltpu.MemorySpace.VMEM)
        b_spec = pl.BlockSpec(memory_space=pltpu.MemorySpace.VMEM)
        io_spec = pl.BlockSpec((tb, cout_p), lambda i: (i, 0))
        dims = ("parallel",)

    in_specs = [x_spec, w_spec, b_spec] + ([io_spec] if training else [])

    # ---------------- VMEM budget / cost hints ----------------
    if n_tiled:
        w_vmem = 2 * cin_p * tn * itemsize + 2 * tn * 4
    else:
        w_vmem = cin_p * cout_p * itemsize + cout_p * 4
    act_vmem = 2 * tb * cin_p * itemsize + 2 * tb * tn * 4
    if training:
        act_vmem += 2 * tb * tn * 4
    vmem_limit = int(min(max(2 * (w_vmem + act_vmem), 32 * 1024 * 1024),
                         48 * 1024 * 1024))  # stays within v7x's smaller VMEM

    out_bytes = b_pad * cout_p * jnp.dtype(out_dtype).itemsize
    cost = pl.CostEstimate(
        flops=2 * b_pad * cin_p * cout_p,
        transcendentals=0,
        bytes_accessed=sum(int(a.size) * a.dtype.itemsize for a in inputs) + out_bytes,
    )

    keep_threshold = min(int(round(p * (1 << 32))), (1 << 32) - 1)
    inv_keep = 1.0 / (1.0 - p) if p < 1.0 else 0.0

    kernel = functools.partial(
        _mlp_kernel, training=training,
        keep_threshold=keep_threshold, inv_keep=inv_keep)

    out = pl.pallas_call(
        kernel,
        out_shape=jax.ShapeDtypeStruct((b_pad, cout_p), out_dtype),
        grid=grid,
        in_specs=in_specs,
        out_specs=io_spec,
        compiler_params=pltpu.CompilerParams(
            dimension_semantics=dims,
            vmem_limit_bytes=vmem_limit,
        ),
        cost_estimate=cost,
    )(*inputs)

    return out[:B, :cout]


if __name__ == "__main__":
    # Small shapes consistent with the module: batch=8, in_channel=32, out_channel=32
    B, in_channel, out_channel = 8, 32, 32

    key = jax.random.PRNGKey(0)
    kx, kw, kb, kd = jax.random.split(key, 4)

    x = jax.random.normal(kx, (B, in_channel), dtype=jnp.float32)
    # nn.Linear-style uniform(-1/sqrt(in), 1/sqrt(in)) init.
    bound = 1.0 / (in_channel ** 0.5)
    w = jax.random.uniform(kw, (out_channel, in_channel), jnp.float32, -bound, bound)
    b = jax.random.uniform(kb, (out_channel,), jnp.float32, -bound, bound)

    # Eval mode (deterministic): dropout is the identity, matches F.dropout(training=False).
    out = jax.block_until_ready(mlp_block(x, w, b, training=False))
    ref = jnp.maximum(x @ w.T + b, 0.0)
    assert out.shape == (B, out_channel)
    assert jnp.allclose(out, ref, atol=1e-4, rtol=1e-4)

    # bf16 matmul inputs (MXU-friendly on v6e/v7x), f32 accumulation + f32 tail.
    out_bf16 = jax.block_until_ready(
        mlp_block(x, w, b, training=False, matmul_dtype=jnp.bfloat16))
    assert jnp.allclose(out_bf16, ref, atol=3e-2, rtol=3e-2)

    # Training mode: stochastic dropout (p=0.5), mask from host-generated uint32 bits.
    out_train = jax.block_until_ready(mlp_block(x, w, b, training=True, rng_key=kd))
    assert out_train.shape == (B, out_channel)
    kept = out_train != 0.0
    # Kept activations are exactly 2 * ReLU(fc1(x)); dropped ones are exactly 0.
    assert jnp.allclose(jnp.where(kept, out_train, 0.0),
                        jnp.where(kept, 2.0 * ref, 0.0), atol=1e-4)

    print("KERNEL_OK")
</pallas_src>

<mosaic_0001>
module attributes {stable_mosaic.version = 11 : i64} {
  func.func @_mlp_kernel(%arg0: i32, %arg1: memref<8x128xf32, #tpu.memory_space<vmem>>, %arg2: memref<128x128xf32, #tpu.memory_space<vmem>>, %arg3: memref<1x128xf32, #tpu.memory_space<vmem>>, %arg4: memref<8x128xf32, #tpu.memory_space<vmem>>) attributes {dimension_semantics = [#tpu.dimension_semantics<parallel>], iteration_bounds = array<i64: 1>, scalar_prefetch = 0 : i64, scratch_operands = 0 : i64, tpu.core_type = #tpu.core_type<tc>, window_params = [{transform_indices = @transform_0, window_bounds = array<i64: 8, 128>}, {pipeline_mode = #tpu.pipeline_mode<synchronous>, transform_indices = @transform_1, window_bounds = array<i64: 128, 128>}, {pipeline_mode = #tpu.pipeline_mode<synchronous>, transform_indices = @transform_2, window_bounds = array<i64: 1, 128>}, {transform_indices = @transform_3, window_bounds = array<i64: 8, 128>}]} {
    %c0 = arith.constant 0 : index
    %c0_0 = arith.constant 0 : index
    %0 = vector.load %arg1[%c0, %c0_0] : memref<8x128xf32, #tpu.memory_space<vmem>>, vector<8x128xf32>
    %c0_1 = arith.constant 0 : index
    %c0_2 = arith.constant 0 : index
    %1 = vector.load %arg2[%c0_1, %c0_2] : memref<128x128xf32, #tpu.memory_space<vmem>>, vector<128x128xf32>
    %cst = arith.constant dense<0.000000e+00> : vector<8x128xf32>
    %2 = tpu.matmul %0, %1, %cst {dimension_numbers = #tpu.dot_dimension_numbers<[1], [0], [0], [1], [0, 0, 1, 1], [], []>} : vector<8x128xf32>, vector<128x128xf32>, vector<8x128xf32> -> vector<8x128xf32>
    %c0_3 = arith.constant 0 : index
    %c0_4 = arith.constant 0 : index
    %3 = vector.load %arg3[%c0_3, %c0_4] : memref<1x128xf32, #tpu.memory_space<vmem>>, vector<1x128xf32>
    %4 = vector.broadcast %3 : vector<1x128xf32> to vector<8x128xf32>
    %5 = arith.addf %2, %4 : vector<8x128xf32>
    %cst_5 = arith.constant 0.000000e+00 : f32
    %6 = vector.broadcast %cst_5 : f32 to vector<8x128xf32>
    %7 = arith.maximumf %5, %6 : vector<8x128xf32>
    %c0_6 = arith.constant 0 : index
    %c0_7 = arith.constant 0 : index
    %8 = vector.load %arg4[%c0_6, %c0_7] : memref<8x128xf32, #tpu.memory_space<vmem>>, vector<8x128xf32>
    tpu.vector_store %arg4[%c0_6, %c0_7], %7 {strides = array<i32>} : memref<8x128xf32, #tpu.memory_space<vmem>>, vector<8x128xf32>,
    return
  }
  func.func @transform_0(%arg0: i32) -> (i32, i32) {
    %c0_i32 = arith.constant 0 : i32
    %c0_i32_0 = arith.constant 0 : i32
    return %arg0, %c0_i32 : i32, i32
  }
  func.func @transform_1(%arg0: i32) -> (i32, i32) {
    %c0_i32 = arith.constant 0 : i32
    %c0_i32_0 = arith.constant 0 : i32
    %c0_i32_1 = arith.constant 0 : i32
    return %c0_i32, %c0_i32_0 : i32, i32
  }
  func.func @transform_2(%arg0: i32) -> (i32, i32) {
    %c0_i32 = arith.constant 0 : i32
    %c0_i32_0 = arith.constant 0 : i32
    %c0_i32_1 = arith.constant 0 : i32
    return %c0_i32, %c0_i32_0 : i32, i32
  }
  func.func @transform_3(%arg0: i32) -> (i32, i32) {
    %c0_i32 = arith.constant 0 : i32
    %c0_i32_0 = arith.constant 0 : i32
    return %arg0, %c0_i32 : i32, i32
  }
}

</mosaic_0001>

<llo_original>
// kernel: tpu_custom_call.1
$region0: #{tpu_custom_call.1}
  #allocation0 [shape = 'u32[]', space=smem, size = 0x4, offset = 0x4, fixed_abs, tag = 'smem constant byte address 0x4 - core index']
  #allocation1 [shape = 'u32[144,128]{1,0:T(1,128)}', space=vmem, size = 0x12000, scoped, tag = 'internal scratch']
  %s0 = inlined_call_operand.hbm [shape: f32[8,128], index: 0, kind: input, shape index: {}]
  %s1 = inlined_call_operand.hbm [shape: f32[128,128], index: 1, kind: input, shape index: {}]
  %s2 = inlined_call_operand.vmem [shape: f32[1,128], index: 2, kind: input, shape index: {}]
  %s3 = inlined_call_operand.hbm [shape: f32[8,128], index: 3, kind: output, shape index: {}]
  %s4 = sld [smem:[#allocation0]]
  $region30: #{tpu_custom_call.1} parent=0
    _
  %s6 = ssub.s32 1, %s4
  %s7 = scalar_select 0, %s6, %s4
  $region1: #{tpu_custom_call.1} parent=0
    #allocation2 [shape = 'u8[4096]{0}', space=vmem, size = 0x1000, scoped, tag = 'input window, operand 0, single buffered']
    #allocation3 [shape = 's32[1]{0}', space=sflag, size = 0x4, scoped, tag = 'scoped memory for tpu_custom_call.1']
    #allocation4 [shape = 's32[1]{0}', space=sflag, size = 0x4, scoped, tag = 'scoped memory for tpu_custom_call.1']
    #allocation5 [shape = 'u8[65536]{0}', space=vmem, size = 0x10000, scoped, tag = 'input window, operand 1, single buffered']
    #allocation6 [shape = 's32[1]{0}', space=sflag, size = 0x4, scoped, tag = 'scoped memory for tpu_custom_call.1']
    #allocation7 [shape = 'u8[4096]{0}', space=vmem, size = 0x1000, scoped, tag = 'output window, operand 0, single buffered']
    %8 = vsyncpa [#allocation3], 0
    %9 = vsyncpa [#allocation6], 0
    %10 = vsyncpa [#allocation4], 0
    // Predicated region
    $region2: #{tpu_custom_call.1} parent=1 // pred_check
      _
    $region3: #{tpu_custom_call.1} parent=1 // pred_check_branch
      %12 = sbr.rel (0) target = $region5
    $region4: #{tpu_custom_call.1} parent=1 // pred_region
      %s14 = ssub.s32 128, 128
      %15 = vsyncadd [#allocation3], %s14
      %s17 = sshll.u32 [#allocation2], 4
      %s18 = int_to_ptr.vmem [resolvable:$true] %s17
      %20 = dma.hbm_to_vmem [thread:$0]  %s0, 128, %s18, [#allocation3]
    $region5: #{tpu_custom_call.1} parent=1 // pred_fallthru
      _
    // Predicated region
    $region6: #{tpu_custom_call.1} parent=1 // pred_check
      _
    $region7: #{tpu_custom_call.1} parent=1 // pred_check_branch
      %22 = sbr.rel (0) target = $region9
    $region8: #{tpu_custom_call.1} parent=1 // pred_region
      %s24 = ssub.s32 2048, 2048
      %25 = vsyncadd [#allocation6], %s24
      %s26 = sshll.u32 [#allocation5], 4
      %s27 = int_to_ptr.vmem [resolvable:$true] %s26
      %32 = dma.hbm_to_vmem [thread:$0]  %s1, 2048, %s27, [#allocation6], 128, 128, 8
    $region9: #{tpu_custom_call.1} parent=1 // pred_fallthru
      _
    // Predicated region
    $region10: #{tpu_custom_call.1} parent=1 // pred_check
      _
    $region11: #{tpu_custom_call.1} parent=1 // pred_check_branch
      %34 = sbr.rel (0) target = $region13
    $region12: #{tpu_custom_call.1} parent=1 // pred_region
      _
    $region13: #{tpu_custom_call.1} parent=1 // pred_fallthru
      _
    // Predicated region
    $region14: #{tpu_custom_call.1} parent=1 // pred_check
      _
    $region15: #{tpu_custom_call.1} parent=1 // pred_check_branch
      %36 = sbr.rel (0) target = $region17
    $region16: #{tpu_custom_call.1} parent=1 // pred_region
      %37 = dma.done [#allocation3], 128
    $region17: #{tpu_custom_call.1} parent=1 // pred_fallthru
      _
    // Predicated region
    $region18: #{tpu_custom_call.1} parent=1 // pred_check
      _
    $region19: #{tpu_custom_call.1} parent=1 // pred_check_branch
      %39 = sbr.rel (0) target = $region21
    $region20: #{tpu_custom_call.1} parent=1 // pred_region
      %40 = dma.done [#allocation6], 2048
    $region21: #{tpu_custom_call.1} parent=1 // pred_fallthru
      _
    %v41 = vld [vmem:[#allocation2] sm:$0xff]
    %v42 = vld [vmem:[#allocation5] sm:$0xff]
    %v43 = vld [vmem:[#allocation5 + $0x8] sm:$0xff]
    %v44 = vld [vmem:[#allocation5 + $0x10] sm:$0xff]
    %v45 = vld [vmem:[#allocation5 + $0x18] sm:$0xff]
    %v46 = vld [vmem:[#allocation5 + $0x20] sm:$0xff]
    %v47 = vld [vmem:[#allocation5 + $0x28] sm:$0xff]
    %v48 = vld [vmem:[#allocation5 + $0x30] sm:$0xff]
    %v49 = vld [vmem:[#allocation5 + $0x38] sm:$0xff]
    %v50 = vld [vmem:[#allocation5 + $0x40] sm:$0xff]
    %v51 = vld [vmem:[#allocation5 + $0x48] sm:$0xff]
    %v52 = vld [vmem:[#allocation5 + $0x50] sm:$0xff]
    %v53 = vld [vmem:[#allocation5 + $0x58] sm:$0xff]
    %v54 = vld [vmem:[#allocation5 + $0x60] sm:$0xff]
    %v55 = vld [vmem:[#allocation5 + $0x68] sm:$0xff]
    %v56 = vld [vmem:[#allocation5 + $0x70] sm:$0xff]
    %v57 = vld [vmem:[#allocation5 + $0x78] sm:$0xff]
    %v58 = vld [vmem:[%s2] sm:$0x1]
    %v60 = vlaneseq
    %v61 = vshrl.u32 %v60, 7
    %v62 = vsub.s32 0, %v61
    %v63 = vrot.slane %v58, %v62
    %65 = vmatprep.subr.mxu0 0.0
    %66 = vmatpush1.msra.mxu0 %v42
    %67 = vmatprep.subr.mxu0 0.0
    %68 = vmatpush1.msra.mxu0 %v43
    %69 = vmatprep.subr.mxu0 0.0
    %70 = vmatpush1.msra.mxu0 %v44
    %71 = vmatprep.subr.mxu0 0.0
    %72 = vmatpush1.msra.mxu0 %v45
    %73 = vmatprep.subr.mxu0 0.0
    %74 = vmatpush1.msra.mxu0 %v46
    %75 = vmatprep.subr.mxu0 0.0
    %76 = vmatpush1.msra.mxu0 %v47
    %77 = vmatprep.subr.mxu0 0.0
    %78 = vmatpush1.msra.mxu0 %v48
    %79 = vmatprep.subr.mxu0 0.0
    %80 = vmatpush1.msra.mxu0 %v49
    %81 = vmatprep.subr.mxu0 0.0
    %82 = vmatpush1.msra.mxu0 %v50
    %83 = vmatprep.subr.mxu0 0.0
    %84 = vmatpush1.msra.mxu0 %v51
    %85 = vmatprep.subr.mxu0 0.0
    %86 = vmatpush1.msra.mxu0 %v52
    %87 = vmatprep.subr.mxu0 0.0
    %88 = vmatpush1.msra.mxu0 %v53
    %89 = vmatprep.subr.mxu0 0.0
    %90 = vmatpush1.msra.mxu0 %v54
    %91 = vmatprep.subr.mxu0 0.0
    %92 = vmatpush1.msra.mxu0 %v55
    %93 = vmatprep.subr.mxu0 0.0
    %94 = vmatpush1.msra.mxu0 %v56
    %95 = vmatprep.subr.mxu0 0.0
    %96 = vmatpush1.msra.mxu0 %v57
    %97 = vmatprep.subr.mxu0 0.0
    %98 = vmatpush1.msra.mxu0 0.0
    %99 = vmatprep.subr.mxu0 0.0
    %100 = vmatpush1.msra.mxu0 0.0
    %101 = vmatprep.subr.mxu0 0.0
    %102 = vmatpush1.msra.mxu0 0.0
    %103 = vmatprep.subr.mxu0 0.0
    %104 = vmatpush1.msra.mxu0 0.0
    %105 = vmatprep.subr.mxu0 0.0
    %106 = vmatpush1.msra.mxu0 0.0
    %107 = vmatprep.subr.mxu0 0.0
    %108 = vmatpush1.msra.mxu0 0.0
    %109 = vmatprep.subr.mxu0 0.0
    %110 = vmatpush1.msra.mxu0 0.0
    %111 = vmatprep.subr.mxu0 0.0
    %112 = vmatpush1.msra.mxu0 0.0
    %113 = vmatprep.subr.mxu0 0.0
    %114 = vmatpush1.msra.mxu0 0.0
    %115 = vmatprep.subr.mxu0 0.0
    %116 = vmatpush1.msra.mxu0 0.0
    %117 = vmatprep.subr.mxu0 0.0
    %118 = vmatpush1.msra.mxu0 0.0
    %119 = vmatprep.subr.mxu0 0.0
    %120 = vmatpush1.msra.mxu0 0.0
    %121 = vmatprep.subr.mxu0 0.0
    %122 = vmatpush1.msra.mxu0 0.0
    %123 = vmatprep.subr.mxu0 0.0
    %124 = vmatpush1.msra.mxu0 0.0
    %125 = vmatprep.subr.mxu0 0.0
    %126 = vmatpush1.msra.mxu0 0.0
    %127 = vmatprep.subr.mxu0 0.0
    %128 = vmatpush1.msra.mxu0 0.0
    %129 = vmatprep.mubr.f32.mxu0 0.0
    %130 = vmatmul.mubr.f32.gmra.mrb[0].mxu0 %v41
    %v131 = vpop.f32.mrb[0].mxu0
    %v132 = vadd.f32 %v63, %v131
    %v133 = vpop.f32.mrb[0].mxu0
    %134 = vdwg.mxu0
    %v135 = vmax.f32 %v132, 0.0
    %136 = vst [vmem:[#allocation7] sm:$0xff] %v135
    // Predicated region
    $region22: #{tpu_custom_call.1} parent=1 // pred_check
      _
    $region23: #{tpu_custom_call.1} parent=1 // pred_check_branch
      %138 = sbr.rel (0) target = $region25
    $region24: #{tpu_custom_call.1} parent=1 // pred_region
      %s140 = ssub.s32 128, 128
      %141 = vsyncadd [#allocation4], %s140
      %s143 = sshll.u32 [#allocation7], 4
      %s144 = int_to_ptr.vmem [resolvable:$true] %s143
      %146 = dma.vmem_to_hbm [thread:$0]  %s144, 128, %s3, [#allocation4]
    $region25: #{tpu_custom_call.1} parent=1 // pred_fallthru
      _
    // Predicated region
    $region26: #{tpu_custom_call.1} parent=1 // pred_check
      _
    $region27: #{tpu_custom_call.1} parent=1 // pred_check_branch
      %148 = sbr.rel (0) target = $region29
    $region28: #{tpu_custom_call.1} parent=1 // pred_region
      %149 = dma.done [#allocation4], 128
    $region29: #{tpu_custom_call.1} parent=1 // pred_fallthru
      _
    %150 = vsyncpa [#allocation3], 1
    %151 = vsyncpa [#allocation6], 1
    %152 = vsyncpa [#allocation4], 1

</llo_original>
